<compile_context>
chip_gen: v5e
topology: v5e:2x2
jax: 0.10.0
libtpu: 0.0.40
codegen_flags: <defaults>
</compile_context>

<pallas_src>
import math
from functools import partial

import jax
import jax.numpy as jnp
from jax.experimental import pallas as pl
from jax.experimental.pallas import tpu as pltpu


def _upconv_kernel(x_ref, w_ref, b_ref, o_ref, *, ks, Wp, TNo):
    """One (batch, row-tile, cout-tile) step.

    x_ref: (Cin, Lslab)        bf16 halo row-slab, flattened padded spatial
    w_ref: (ks*ks, TCout, Cin) bf16 per-tap weights (resident)
    b_ref: (TCout, 1)          f32 bias
    o_ref: (TCout, TNo)        conv output for TNo = TH*Wp anchors (lane-dense)
    """
    acc = jnp.zeros(o_ref.shape, jnp.float32)
    for kh in range(ks):
        for kw in range(ks):
            shift = kh * Wp + kw                      # static lane offset into the slab
            xs = x_ref[:, shift:shift + TNo]          # (Cin, TNo) bf16
            acc = acc + jnp.dot(w_ref[kh * ks + kw], xs,
                                preferred_element_type=jnp.float32)
    o_ref[...] = (acc + b_ref[...]).astype(o_ref.dtype)


def prepare_weights(w_oihw, bias):
    """Hoisted out of the jitted forward: OIHW -> (ks*ks, Cout, Cin) bf16 taps."""
    Cout, Cin, KH, KW = w_oihw.shape
    w_taps = jnp.transpose(w_oihw, (2, 3, 0, 1)).reshape(KH * KW, Cout, Cin)
    return w_taps.astype(jnp.bfloat16), bias.reshape(Cout, 1).astype(jnp.float32)


def _vmem_plan():
    """Generation-aware block budget / vmem limit (v7x has 64 MiB VMEM per TC)."""
    try:
        cap = int(getattr(pltpu.get_tpu_info(), "vmem_capacity_bytes", 64 << 20))
    except Exception:  # conservative default if the query is unavailable
        cap = 64 << 20
    block_budget = min(int(cap * 0.42), 48 << 20)   # ~27 MiB on v7x, 48 MiB on v5e/v6e
    vmem_limit = int(min(cap * 0.9, block_budget + (16 << 20)))
    return block_budget, vmem_limit


def _plan_tiles(H, W, ks, Cin, Cout):
    """Pick row-tile TH, padded row count, Cout tile and vmem limit."""
    p = (ks - 1) // 2
    Wp = W + 2 * p
    block_budget, vmem_limit = _vmem_plan()

    # Cout tiling only kicks in for very large Cout; tile is a multiple of 8
    # sublanes (or equals Cout) so the weight/output blocks keep clean tiling.
    tco = Cout
    if Cout > 256:
        for d in range(256, 7, -8):
            if Cout % d == 0:
                tco = d
                break

    fixed = 2 * (ks * ks * tco * Cin * 2 + tco * 4)   # double-buffered weights + bias

    def step_bytes(th):
        slab = Cin * ((th + 2 * p) * Wp + 2 * p) * 2  # bf16 input slab
        outb = tco * th * Wp * 4                      # f32 output block
        return fixed + 2 * (slab + outb)              # double-buffered blocks

    if step_bytes(H) <= block_budget:
        TH = H                                        # whole image: single tile (exempt)
    else:
        unit = 128 // math.gcd(Wp, 128)               # smallest TH with TH*Wp % 128 == 0
        TH = unit
        while step_bytes(TH + unit) <= block_budget and TH + unit < H:
            TH += unit
        # TODO(synk): if even `unit` rows exceed the budget (huge Cin*Wp), add a
        # W-tiling axis / pad Wp to a multiple of 128 instead of relying on the
        # raised vmem limit.
    nt = -(-H // TH)
    if nt == 1:
        TH = H
    H_pad = nt * TH
    return p, Wp, TH, H_pad, nt, tco, vmem_limit


@partial(jax.jit, static_argnames=("ks", "strd"))
def upconv_forward(x_nchw, w_taps, bias_col, ks, strd):
    """Forward of UpConv(conv_type='pshuffel'): conv (Pallas) + PixelShuffle."""
    if ks % 2 == 0:
        # pad=(ks-1)//2 reproduces torch's 'same'-size behavior only for odd ks.
        raise NotImplementedError("UpConv Pallas kernel requires odd kernel size ks.")
    B, Cin, H, W = x_nchw.shape
    KK, Cout, Cin_w = w_taps.shape
    assert KK == ks * ks and Cin_w == Cin, (w_taps.shape, ks, Cin)
    if strd != 1:
        assert Cout % (strd * strd) == 0, (Cout, strd)

    p, Wp, TH, H_pad, nt, tco, vmem_limit = _plan_tiles(H, W, ks, Cin, Cout)
    nct = Cout // tco
    TNo = TH * Wp                                  # anchors (lanes) per row tile
    Lslab = (TH + 2 * p) * Wp + 2 * p              # halo slab length per tile

    # Pad (rows: p top, p + row-alignment bottom; cols: p each side), cast to
    # bf16, flatten spatial, and cut into nt overlapping halo slabs.  This is
    # the only input relayout: ~3% duplication, not ks*ks x.
    xp = jnp.pad(x_nchw.astype(jnp.bfloat16),
                 ((0, 0), (0, 0), (p, p + H_pad - H), (p, p)))
    xflat = xp.reshape(B, Cin, (H_pad + 2 * p) * Wp)
    xflat = jnp.pad(xflat, ((0, 0), (0, 0), (0, 2 * p)))   # right-edge overrun of last row
    slabs = jnp.stack([xflat[:, :, t * TH * Wp: t * TH * Wp + Lslab]
                       for t in range(nt)], axis=1)        # (B, nt, Cin, Lslab)

    y = pl.pallas_call(
        partial(_upconv_kernel, ks=ks, Wp=Wp, TNo=TNo),
        out_shape=jax.ShapeDtypeStruct((B, Cout, nt * TNo), x_nchw.dtype),
        grid=(B, nt, nct),
        in_specs=[
            pl.BlockSpec((None, None, Cin, Lslab), lambda b, t, c: (b, t, 0, 0)),
            pl.BlockSpec((ks * ks, tco, Cin), lambda b, t, c: (0, c, 0)),
            pl.BlockSpec((tco, 1), lambda b, t, c: (c, 0)),
        ],
        out_specs=pl.BlockSpec((None, tco, TNo), lambda b, t, c: (b, c, t)),
        compiler_params=pltpu.CompilerParams(
            dimension_semantics=("parallel", "parallel", "parallel"),
            vmem_limit_bytes=vmem_limit),
        cost_estimate=pl.CostEstimate(
            flops=int(2 * ks * ks * Cin * Cout * B * nt * TNo),
            transcendentals=0,
            bytes_accessed=int(B * nt * Cin * Lslab * 2 + ks * ks * Cout * Cin * 2
                               + Cout * 4 + B * Cout * nt * TNo * 4)),
    )(slabs, w_taps, bias_col)

    # Drop alignment rows / halo columns -> NCHW conv output (B, Cout, H, W).
    y = y.reshape(B, Cout, H_pad, Wp)[:, :, :H, :W]

    # PixelShuffle(strd): one reshape + transpose pass in the wrapper
    # (~one extra output round-trip through HBM; see TODO(synk) above).
    if strd == 1:
        return y
    C = Cout // (strd * strd)
    y = y.reshape(B, C, strd, strd, H, W)          # (b, c, i, j, h, w)
    y = jnp.transpose(y, (0, 1, 4, 2, 5, 3))       # (b, c, h, i, w, j)
    return y.reshape(B, C, H * strd, W * strd)


if __name__ == "__main__":
    # UpConv(ks=3, ngf=4, new_ngf=4, strd=2, conv_type='pshuffel', bias=True)
    ks, ngf, new_ngf, strd = 3, 4, 4, 2
    B, H, W = 2, 16, 16
    Cout = new_ngf * strd * strd

    key = jax.random.PRNGKey(0)
    kx, kwt, kb = jax.random.split(key, 3)
    x = jax.random.normal(kx, (B, ngf, H, W), jnp.float32)                 # NCHW
    w = jax.random.normal(kwt, (Cout, ngf, ks, ks), jnp.float32) * 0.1     # OIHW
    b = jax.random.normal(kb, (Cout,), jnp.float32) * 0.1

    w_taps, b_col = prepare_weights(w, b)          # done once, outside the jitted path
    out = upconv_forward(x, w_taps, b_col, ks=ks, strd=strd)
    out = jax.block_until_ready(out)
    assert out.shape == (B, new_ngf, H * strd, W * strd), out.shape

    # Reference: XLA conv in NCHW (same semantics as torch.nn.Conv2d) + PixelShuffle.
    pad = (ks - 1) // 2
    ref_conv = jax.lax.conv_general_dilated(
        x, w, window_strides=(1, 1), padding=[(pad, pad), (pad, pad)],
        dimension_numbers=("NCHW", "OIHW", "NCHW")) + b[None, :, None, None]
    r = strd
    ref = ref_conv.reshape(B, new_ngf, r, r, H, W)
    ref = jnp.transpose(ref, (0, 1, 4, 2, 5, 3)).reshape(B, new_ngf, H * r, W * r)
    err = float(jnp.max(jnp.abs(out - ref)))
    # bf16 operands / f32 accumulation: ~1e-2-level agreement expected.
    assert jnp.allclose(out, ref, atol=5e-2, rtol=5e-2), err

    print("KERNEL_OK")
</pallas_src>

<mosaic_0001>
module attributes {stable_mosaic.version = 11 : i64} {
  func.func @_upconv_kernel(%arg0: i32, %arg1: i32, %arg2: i32, %arg3: memref<1x1x4x326xbf16, #tpu.memory_space<vmem>>, %arg4: memref<9x16x4xbf16, #tpu.memory_space<vmem>>, %arg5: memref<16x1xf32, #tpu.memory_space<vmem>>, %arg6: memref<1x16x288xf32, #tpu.memory_space<vmem>>) attributes {dimension_semantics = [#tpu.dimension_semantics<parallel>, #tpu.dimension_semantics<parallel>, #tpu.dimension_semantics<parallel>], iteration_bounds = array<i64: 2, 1, 1>, scalar_prefetch = 0 : i64, scratch_operands = 0 : i64, tpu.core_type = #tpu.core_type<tc>, window_params = [{transform_indices = @transform_0, window_bounds = array<i64: 1, 1, 4, 326>}, {transform_indices = @transform_1, window_bounds = array<i64: 9, 16, 4>}, {transform_indices = @transform_2, window_bounds = array<i64: 16, 1>}, {transform_indices = @transform_3, window_bounds = array<i64: 1, 16, 288>}]} {
    %cst = arith.constant 0.000000e+00 : f32
    %0 = vector.broadcast %cst : f32 to vector<16x288xf32>
    %c0 = arith.constant 0 : index
    %c0_0 = arith.constant 0 : index
    %c0_1 = arith.constant 0 : index
    %c0_2 = arith.constant 0 : index
    %1 = vector.load %arg3[%c0, %c0_0, %c0_1, %c0_2] : memref<1x1x4x326xbf16, #tpu.memory_space<vmem>>, vector<1x1x4x288xbf16>
    %2 = vector.shape_cast %1 : vector<1x1x4x288xbf16> to vector<4x288xbf16>
    %c0_3 = arith.constant 0 : index
    %c0_4 = arith.constant 0 : index
    %c0_5 = arith.constant 0 : index
    %3 = vector.load %arg4[%c0_3, %c0_4, %c0_5] : memref<9x16x4xbf16, #tpu.memory_space<vmem>>, vector<1x16x4xbf16>
    %4 = vector.shape_cast %3 : vector<1x16x4xbf16> to vector<16x4xbf16>
    %cst_6 = arith.constant dense<0.000000e+00> : vector<16x288xf32>
    %5 = tpu.matmul %4, %2, %cst_6 {dimension_numbers = #tpu.dot_dimension_numbers<[1], [0], [0], [1], [0, 0, 1, 1], [], []>} : vector<16x4xbf16>, vector<4x288xbf16>, vector<16x288xf32> -> vector<16x288xf32>
    %6 = arith.addf %0, %5 : vector<16x288xf32>
    %c0_7 = arith.constant 0 : index
    %c0_8 = arith.constant 0 : index
    %c0_9 = arith.constant 0 : index
    %c1 = arith.constant 1 : index
    %7 = vector.load %arg3[%c0_7, %c0_8, %c0_9, %c1] : memref<1x1x4x326xbf16, #tpu.memory_space<vmem>>, vector<1x1x4x288xbf16>
    %8 = vector.shape_cast %7 : vector<1x1x4x288xbf16> to vector<4x288xbf16>
    %c1_10 = arith.constant 1 : index
    %c0_11 = arith.constant 0 : index
    %c0_12 = arith.constant 0 : index
    %9 = vector.load %arg4[%c1_10, %c0_11, %c0_12] : memref<9x16x4xbf16, #tpu.memory_space<vmem>>, vector<1x16x4xbf16>
    %10 = vector.shape_cast %9 : vector<1x16x4xbf16> to vector<16x4xbf16>
    %cst_13 = arith.constant dense<0.000000e+00> : vector<16x288xf32>
    %11 = tpu.matmul %10, %8, %cst_13 {dimension_numbers = #tpu.dot_dimension_numbers<[1], [0], [0], [1], [0, 0, 1, 1], [], []>} : vector<16x4xbf16>, vector<4x288xbf16>, vector<16x288xf32> -> vector<16x288xf32>
    %12 = arith.addf %6, %11 : vector<16x288xf32>
    %c0_14 = arith.constant 0 : index
    %c0_15 = arith.constant 0 : index
    %c0_16 = arith.constant 0 : index
    %c2 = arith.constant 2 : index
    %13 = vector.load %arg3[%c0_14, %c0_15, %c0_16, %c2] : memref<1x1x4x326xbf16, #tpu.memory_space<vmem>>, vector<1x1x4x288xbf16>
    %14 = vector.shape_cast %13 : vector<1x1x4x288xbf16> to vector<4x288xbf16>
    %c2_17 = arith.constant 2 : index
    %c0_18 = arith.constant 0 : index
    %c0_19 = arith.constant 0 : index
    %15 = vector.load %arg4[%c2_17, %c0_18, %c0_19] : memref<9x16x4xbf16, #tpu.memory_space<vmem>>, vector<1x16x4xbf16>
    %16 = vector.shape_cast %15 : vector<1x16x4xbf16> to vector<16x4xbf16>
    %cst_20 = arith.constant dense<0.000000e+00> : vector<16x288xf32>
    %17 = tpu.matmul %16, %14, %cst_20 {dimension_numbers = #tpu.dot_dimension_numbers<[1], [0], [0], [1], [0, 0, 1, 1], [], []>} : vector<16x4xbf16>, vector<4x288xbf16>, vector<16x288xf32> -> vector<16x288xf32>
    %18 = arith.addf %12, %17 : vector<16x288xf32>
    %c0_21 = arith.constant 0 : index
    %c0_22 = arith.constant 0 : index
    %c0_23 = arith.constant 0 : index
    %c18 = arith.constant 18 : index
    %19 = vector.load %arg3[%c0_21, %c0_22, %c0_23, %c18] : memref<1x1x4x326xbf16, #tpu.memory_space<vmem>>, vector<1x1x4x288xbf16>
    %20 = vector.shape_cast %19 : vector<1x1x4x288xbf16> to vector<4x288xbf16>
    %c3 = arith.constant 3 : index
    %c0_24 = arith.constant 0 : index
    %c0_25 = arith.constant 0 : index
    %21 = vector.load %arg4[%c3, %c0_24, %c0_25] : memref<9x16x4xbf16, #tpu.memory_space<vmem>>, vector<1x16x4xbf16>
    %22 = vector.shape_cast %21 : vector<1x16x4xbf16> to vector<16x4xbf16>
    %cst_26 = arith.constant dense<0.000000e+00> : vector<16x288xf32>
    %23 = tpu.matmul %22, %20, %cst_26 {dimension_numbers = #tpu.dot_dimension_numbers<[1], [0], [0], [1], [0, 0, 1, 1], [], []>} : vector<16x4xbf16>, vector<4x288xbf16>, vector<16x288xf32> -> vector<16x288xf32>
    %24 = arith.addf %18, %23 : vector<16x288xf32>
    %c0_27 = arith.constant 0 : index
    %c0_28 = arith.constant 0 : index
    %c0_29 = arith.constant 0 : index
    %c19 = arith.constant 19 : index
    %25 = vector.load %arg3[%c0_27, %c0_28, %c0_29, %c19] : memref<1x1x4x326xbf16, #tpu.memory_space<vmem>>, vector<1x1x4x288xbf16>
    %26 = vector.shape_cast %25 : vector<1x1x4x288xbf16> to vector<4x288xbf16>
    %c4 = arith.constant 4 : index
    %c0_30 = arith.constant 0 : index
    %c0_31 = arith.constant 0 : index
    %27 = vector.load %arg4[%c4, %c0_30, %c0_31] : memref<9x16x4xbf16, #tpu.memory_space<vmem>>, vector<1x16x4xbf16>
    %28 = vector.shape_cast %27 : vector<1x16x4xbf16> to vector<16x4xbf16>
    %cst_32 = arith.constant dense<0.000000e+00> : vector<16x288xf32>
    %29 = tpu.matmul %28, %26, %cst_32 {dimension_numbers = #tpu.dot_dimension_numbers<[1], [0], [0], [1], [0, 0, 1, 1], [], []>} : vector<16x4xbf16>, vector<4x288xbf16>, vector<16x288xf32> -> vector<16x288xf32>
    %30 = arith.addf %24, %29 : vector<16x288xf32>
    %c0_33 = arith.constant 0 : index
    %c0_34 = arith.constant 0 : index
    %c0_35 = arith.constant 0 : index
    %c20 = arith.constant 20 : index
    %31 = vector.load %arg3[%c0_33, %c0_34, %c0_35, %c20] : memref<1x1x4x326xbf16, #tpu.memory_space<vmem>>, vector<1x1x4x288xbf16>
    %32 = vector.shape_cast %31 : vector<1x1x4x288xbf16> to vector<4x288xbf16>
    %c5 = arith.constant 5 : index
    %c0_36 = arith.constant 0 : index
    %c0_37 = arith.constant 0 : index
    %33 = vector.load %arg4[%c5, %c0_36, %c0_37] : memref<9x16x4xbf16, #tpu.memory_space<vmem>>, vector<1x16x4xbf16>
    %34 = vector.shape_cast %33 : vector<1x16x4xbf16> to vector<16x4xbf16>
    %cst_38 = arith.constant dense<0.000000e+00> : vector<16x288xf32>
    %35 = tpu.matmul %34, %32, %cst_38 {dimension_numbers = #tpu.dot_dimension_numbers<[1], [0], [0], [1], [0, 0, 1, 1], [], []>} : vector<16x4xbf16>, vector<4x288xbf16>, vector<16x288xf32> -> vector<16x288xf32>
    %36 = arith.addf %30, %35 : vector<16x288xf32>
    %c0_39 = arith.constant 0 : index
    %c0_40 = arith.constant 0 : index
    %c0_41 = arith.constant 0 : index
    %c36 = arith.constant 36 : index
    %37 = vector.load %arg3[%c0_39, %c0_40, %c0_41, %c36] : memref<1x1x4x326xbf16, #tpu.memory_space<vmem>>, vector<1x1x4x288xbf16>
    %38 = vector.shape_cast %37 : vector<1x1x4x288xbf16> to vector<4x288xbf16>
    %c6 = arith.constant 6 : index
    %c0_42 = arith.constant 0 : index
    %c0_43 = arith.constant 0 : index
    %39 = vector.load %arg4[%c6, %c0_42, %c0_43] : memref<9x16x4xbf16, #tpu.memory_space<vmem>>, vector<1x16x4xbf16>
    %40 = vector.shape_cast %39 : vector<1x16x4xbf16> to vector<16x4xbf16>
    %cst_44 = arith.constant dense<0.000000e+00> : vector<16x288xf32>
    %41 = tpu.matmul %40, %38, %cst_44 {dimension_numbers = #tpu.dot_dimension_numbers<[1], [0], [0], [1], [0, 0, 1, 1], [], []>} : vector<16x4xbf16>, vector<4x288xbf16>, vector<16x288xf32> -> vector<16x288xf32>
    %42 = arith.addf %36, %41 : vector<16x288xf32>
    %c0_45 = arith.constant 0 : index
    %c0_46 = arith.constant 0 : index
    %c0_47 = arith.constant 0 : index
    %c37 = arith.constant 37 : index
    %43 = vector.load %arg3[%c0_45, %c0_46, %c0_47, %c37] : memref<1x1x4x326xbf16, #tpu.memory_space<vmem>>, vector<1x1x4x288xbf16>
    %44 = vector.shape_cast %43 : vector<1x1x4x288xbf16> to vector<4x288xbf16>
    %c7 = arith.constant 7 : index
    %c0_48 = arith.constant 0 : index
    %c0_49 = arith.constant 0 : index
    %45 = vector.load %arg4[%c7, %c0_48, %c0_49] : memref<9x16x4xbf16, #tpu.memory_space<vmem>>, vector<1x16x4xbf16>
    %46 = vector.shape_cast %45 : vector<1x16x4xbf16> to vector<16x4xbf16>
    %cst_50 = arith.constant dense<0.000000e+00> : vector<16x288xf32>
    %47 = tpu.matmul %46, %44, %cst_50 {dimension_numbers = #tpu.dot_dimension_numbers<[1], [0], [0], [1], [0, 0, 1, 1], [], []>} : vector<16x4xbf16>, vector<4x288xbf16>, vector<16x288xf32> -> vector<16x288xf32>
    %48 = arith.addf %42, %47 : vector<16x288xf32>
    %c0_51 = arith.constant 0 : index
    %c0_52 = arith.constant 0 : index
    %c0_53 = arith.constant 0 : index
    %c38 = arith.constant 38 : index
    %49 = vector.load %arg3[%c0_51, %c0_52, %c0_53, %c38] : memref<1x1x4x326xbf16, #tpu.memory_space<vmem>>, vector<1x1x4x288xbf16>
    %50 = vector.shape_cast %49 : vector<1x1x4x288xbf16> to vector<4x288xbf16>
    %c8 = arith.constant 8 : index
    %c0_54 = arith.constant 0 : index
    %c0_55 = arith.constant 0 : index
    %51 = vector.load %arg4[%c8, %c0_54, %c0_55] : memref<9x16x4xbf16, #tpu.memory_space<vmem>>, vector<1x16x4xbf16>
    %52 = vector.shape_cast %51 : vector<1x16x4xbf16> to vector<16x4xbf16>
    %cst_56 = arith.constant dense<0.000000e+00> : vector<16x288xf32>
    %53 = tpu.matmul %52, %50, %cst_56 {dimension_numbers = #tpu.dot_dimension_numbers<[1], [0], [0], [1], [0, 0, 1, 1], [], []>} : vector<16x4xbf16>, vector<4x288xbf16>, vector<16x288xf32> -> vector<16x288xf32>
    %54 = arith.addf %48, %53 : vector<16x288xf32>
    %c0_57 = arith.constant 0 : index
    %c0_58 = arith.constant 0 : index
    %55 = vector.load %arg5[%c0_57, %c0_58] : memref<16x1xf32, #tpu.memory_space<vmem>>, vector<16x1xf32>
    %56 = vector.broadcast %55 : vector<16x1xf32> to vector<16x288xf32>
    %57 = arith.addf %54, %56 : vector<16x288xf32>
    %c0_59 = arith.constant 0 : index
    %c0_60 = arith.constant 0 : index
    %c0_61 = arith.constant 0 : index
    %58 = vector.load %arg6[%c0_59, %c0_60, %c0_61] : memref<1x16x288xf32, #tpu.memory_space<vmem>>, vector<1x16x288xf32>
    %59 = vector.shape_cast %58 : vector<1x16x288xf32> to vector<16x288xf32>
    %60 = vector.shape_cast %57 : vector<16x288xf32> to vector<1x16x288xf32>
    tpu.vector_store %arg6[%c0_59, %c0_60, %c0_61], %60 {strides = array<i32>} : memref<1x16x288xf32, #tpu.memory_space<vmem>>, vector<1x16x288xf32>,
    return
  }
  func.func @transform_0(%arg0: i32, %arg1: i32, %arg2: i32) -> (i32, i32, i32, i32) {
    %c0_i32 = arith.constant 0 : i32
    %c0_i32_0 = arith.constant 0 : i32
    %c0_i32_1 = arith.constant 0 : i32
    return %arg0, %arg1, %c0_i32, %c0_i32_0 : i32, i32, i32, i32
  }
  func.func @transform_1(%arg0: i32, %arg1: i32, %arg2: i32) -> (i32, i32, i32) {
    %c0_i32 = arith.constant 0 : i32
    %c0_i32_0 = arith.constant 0 : i32
    %c0_i32_1 = arith.constant 0 : i32
    return %c0_i32, %arg2, %c0_i32_0 : i32, i32, i32
  }
  func.func @transform_2(%arg0: i32, %arg1: i32, %arg2: i32) -> (i32, i32) {
    %c0_i32 = arith.constant 0 : i32
    %c0_i32_0 = arith.constant 0 : i32
    return %arg2, %c0_i32 : i32, i32
  }
  func.func @transform_3(%arg0: i32, %arg1: i32, %arg2: i32) -> (i32, i32, i32) {
    %c0_i32 = arith.constant 0 : i32
    return %arg0, %arg2, %arg1 : i32, i32, i32
  }
}

</mosaic_0001>

<llo_original>
// kernel: upconv_forward.1
$region0: #{upconv_forward.1}
  #allocation0 [shape = 'u32[]', space=smem, size = 0x4, offset = 0x4, fixed_abs, tag = 'smem constant byte address 0x4 - core index']
  #allocation1 [shape = 'u32[72,128]{1,0:T(1,128)}', space=vmem, size = 0x9000, scoped, tag = 'internal scratch']
  %s0 = inlined_call_operand.vmem [shape: bf16[2,1,4,326], index: 0, kind: input, shape index: {}]
  %s1 = inlined_call_operand.vmem [shape: bf16[9,16,4], index: 1, kind: input, shape index: {}]
  %s2 = inlined_call_operand.vmem [shape: f32[16,1], index: 2, kind: input, shape index: {}]
  %s3 = inlined_call_operand.vmem [shape: f32[2,16,288], index: 3, kind: output, shape index: {}]
  %s4 = sld [smem:[#allocation0]]
  $region45: #{upconv_forward.1} parent=0
    _
  %s6 = ssub.s32 1, %s4
  %s7 = scalar_select 0, %s6, %s4
  loop: start=0, step=1, limit=4
  $region2: #{upconv_forward.1} parent=0 // loop_pre_header
    _
  $region3: #{upconv_forward.1} parent=0 // loop_header
    %s9 = sphi 0, %s13
    %p10 = scmp.ge.s32.totalorder %s9, 4
    %s16 = sphi 0, %s35
    %s17 = sphi 0, %s31
    %s18 = sphi 0, %s27
    %s19 = sphi 0, %s16
    %s20 = sphi 0, %s17
    %s21 = sphi 0, %s18
    %s22 = sphi 0, %s19
    %s23 = sphi 0, %s20
    %s24 = sphi 0, %s21
    %s40 = sphi 0, %s42
    %s43 = sphi 0, %s40
    %s44 = sphi 0, %s43
    %s60 = sphi 0, %s44
    %s66 = sphi 0, %s68
    %s69 = sphi 0, %s66
    %s70 = sphi 0, %s69
    %s86 = sphi 0, %s70
    %s92 = sphi 0, %s94
    %s95 = sphi 0, %s92
    %s96 = sphi 0, %s95
    %s112 = sphi 0, %s96
    %s122 = sphi 0, %s124
    %s125 = sphi 0, %s122
    %s126 = sphi 0, %s125
    %s142 = sphi 0, %s126
  $region4: #{upconv_forward.1} parent=0 // loop_header_branch
    %12 = sbr.rel (%p10) target = $region8
  $region5: #{upconv_forward.1} parent=0 // loop_body
    %s14 = ssub.s32 %s9, 1
    %s15 = ssub.s32 %s9, 2
    %s25 = sadd.s32 1, %s18
    %p26 = scmp.ge.s32.totalorder %s25, 1
    %s27 = scalar_select %p26, 0, %s25
    %s28 = sadd.s32 1, %s17
    %s29 = scalar_select %p26, %s28, %s17
    %p30 = scmp.ge.s32.totalorder %s29, 1
    %s31 = scalar_select %p30, 0, %s29
    %s32 = sadd.s32 1, %s16
    %s33 = scalar_select %p30, %s32, %s16
    %p34 = scmp.ge.s32.totalorder %s33, 2
    %s35 = scalar_select %p34, 0, %s33
    %s36 = ssub.s32 %s16, %s35
    %s37 = ssub.s32 %s17, %s31
    %s38 = sor.u32 %s36, %s37
    %p39 = scmp.eq.s32.totalorder %s38, 0
    %s41 = sadd.s32 %s40, 1
    %s42 = scalar_select %p39, %s40, %s41
    %p45 = pneg %p39
    %p46 = scmp.eq.s32.totalorder %s9, 1
    %p47 = por %p45, %p46
    %p48 = scmp.ne.s32.totalorder %s40, %s43
    %p49 = scmp.eq.s32.totalorder %s9, 0
    %p50 = por %p48, %p49
    %p51 = scmp.ne.s32.totalorder %s40, %s43
    %p52 = scmp.eq.s32.totalorder %s14, 1
    %p53 = por %p51, %p52
    %p54 = scmp.ne.s32.totalorder %s43, %s44
    %p55 = scmp.eq.s32.totalorder %s14, 0
    %p56 = por %p54, %p55
    %p57 = scmp.ne.s32.totalorder %s43, %s44
    %p58 = scmp.eq.s32.totalorder %s15, 1
    %p59 = por %p57, %p58
    %p61 = scmp.ne.s32.totalorder %s44, %s60
    %p62 = scmp.eq.s32.totalorder %s15, 0
    %p63 = por %p61, %p62
    %s64 = ssub.s32 %s18, %s27
    %p65 = scmp.eq.s32.totalorder %s64, 0
    %s67 = sadd.s32 %s66, 1
    %s68 = scalar_select %p65, %s66, %s67
    %p71 = pneg %p65
    %p72 = scmp.eq.s32.totalorder %s9, 1
    %p73 = por %p71, %p72
    %p74 = scmp.ne.s32.totalorder %s66, %s69
    %p75 = scmp.eq.s32.totalorder %s9, 0
    %p76 = por %p74, %p75
    %p77 = scmp.ne.s32.totalorder %s66, %s69
    %p78 = scmp.eq.s32.totalorder %s14, 1
    %p79 = por %p77, %p78
    %p80 = scmp.ne.s32.totalorder %s69, %s70
    %p81 = scmp.eq.s32.totalorder %s14, 0
    %p82 = por %p80, %p81
    %p83 = scmp.ne.s32.totalorder %s69, %s70
    %p84 = scmp.eq.s32.totalorder %s15, 1
    %p85 = por %p83, %p84
    %p87 = scmp.ne.s32.totalorder %s70, %s86
    %p88 = scmp.eq.s32.totalorder %s15, 0
    %p89 = por %p87, %p88
    %s90 = ssub.s32 %s18, %s27
    %p91 = scmp.eq.s32.totalorder %s90, 0
    %s93 = sadd.s32 %s92, 1
    %s94 = scalar_select %p91, %s92, %s93
    %p97 = pneg %p91
    %p98 = scmp.eq.s32.totalorder %s9, 1
    %p99 = por %p97, %p98
    %p100 = scmp.ne.s32.totalorder %s92, %s95
    %p101 = scmp.eq.s32.totalorder %s9, 0
    %p102 = por %p100, %p101
    %p103 = scmp.ne.s32.totalorder %s92, %s95
    %p104 = scmp.eq.s32.totalorder %s14, 1
    %p105 = por %p103, %p104
    %p106 = scmp.ne.s32.totalorder %s95, %s96
    %p107 = scmp.eq.s32.totalorder %s14, 0
    %p108 = por %p106, %p107
    %p109 = scmp.ne.s32.totalorder %s95, %s96
    %p110 = scmp.eq.s32.totalorder %s15, 1
    %p111 = por %p109, %p110
    %p113 = scmp.ne.s32.totalorder %s96, %s112
    %p114 = scmp.eq.s32.totalorder %s15, 0
    %p115 = por %p113, %p114
    %s116 = ssub.s32 %s16, %s35
    %s117 = ssub.s32 %s18, %s27
    %s118 = sor.u32 %s116, %s117
    %s119 = ssub.s32 %s17, %s31
    %s120 = sor.u32 %s118, %s119
    %p121 = scmp.eq.s32.totalorder %s120, 0
    %s123 = sadd.s32 %s122, 1
    %s124 = scalar_select %p121, %s122, %s123
    %p127 = pneg %p121
    %p128 = scmp.eq.s32.totalorder %s9, 1
    %p129 = por %p127, %p128
    %p130 = scmp.ne.s32.totalorder %s122, %s125
    %p131 = scmp.eq.s32.totalorder %s9, 0
    %p132 = por %p130, %p131
    %p133 = scmp.ne.s32.totalorder %s122, %s125
    %p134 = scmp.eq.s32.totalorder %s14, 1
    %p135 = por %p133, %p134
    %p136 = scmp.ne.s32.totalorder %s125, %s126
    %p137 = scmp.eq.s32.totalorder %s14, 0
    %p138 = por %p136, %p137
    %p139 = scmp.ne.s32.totalorder %s125, %s126
    %p140 = scmp.eq.s32.totalorder %s15, 1
    %p141 = por %p139, %p140
    %p143 = scmp.ne.s32.totalorder %s126, %s142
    %p144 = scmp.eq.s32.totalorder %s15, 0
    %p145 = por %p143, %p144
    %p146 = scmp.le.s32.totalorder 1, %s9
    %p147 = scmp.lt.s32.totalorder %s9, 3
    %p148 = pnand %p146, %p147
    %p149 = pneg %p148
    // Predicated region
    $region9: #{upconv_forward.1} parent=5 // pred_check
      _
    $region10: #{upconv_forward.1} parent=5 // pred_check_branch
      %151 = sbr.rel (%p148) target = $region12
    $region11: #{upconv_forward.1} parent=5 // pred_region
      %s152 = ssub.s32 %s9, 1
      // Predicated region
      $region13: #{upconv_forward.1} parent=11 // pred_check
        %p153 = pneg %p82
      $region14: #{upconv_forward.1} parent=11 // pred_check_branch
        %155 = sbr.rel (%p153) target = $region16
      $region15: #{upconv_forward.1} parent=11 // pred_region
        %s156 = smul.u32 2, %s21
        %p157 = scmp.lt.s32.totalorder %s156, 1
        %s158 = scalar_select %p157, %s156, 1
        %s159 = smul.addr %s158, 4
        %s160 = scalar_lea.vmem %s1, %s159
        %s161 = smul.u32 2, %s21
      $region16: #{upconv_forward.1} parent=11 // pred_fallthru
        _
      // Predicated region
      $region17: #{upconv_forward.1} parent=11 // pred_check
        %p162 = pneg %p108
      $region18: #{upconv_forward.1} parent=11 // pred_check_branch
        %164 = sbr.rel (%p162) target = $region20
      $region19: #{upconv_forward.1} parent=11 // pred_region
        %s165 = smul.u32 2, %s21
        %p166 = scmp.lt.s32.totalorder %s165, 1
        %s167 = scalar_select %p166, %s165, 1
        %s168 = smul.addr %s167, 8
        %s169 = scalar_lea.vmem %s2, %s168
        %s170 = smul.u32 2, %s21
      $region20: #{upconv_forward.1} parent=11 // pred_fallthru
        _
    $region12: #{upconv_forward.1} parent=5 // pred_fallthru
      _
    %p171 = scmp.lt.s32.totalorder %s9, 2
    // Predicated region
    $region21: #{upconv_forward.1} parent=5 // pred_check
      %p172 = pneg %p171
    $region22: #{upconv_forward.1} parent=5 // pred_check_branch
      %174 = sbr.rel (%p172) target = $region24
    $region23: #{upconv_forward.1} parent=5 // pred_region
      // Predicated region
      $region25: #{upconv_forward.1} parent=23 // pred_check
        %p175 = pneg %p50
      $region26: #{upconv_forward.1} parent=23 // pred_check_branch
        %177 = sbr.rel (%p175) target = $region28
      $region27: #{upconv_forward.1} parent=23 // pred_region
        %p178 = scmp.lt.s32.totalorder %s16, 1
        %s179 = scalar_select %p178, %s16, 1
        %p180 = scmp.lt.s32.totalorder %s17, 0
        %s181 = scalar_select %p180, %s17, 0
        %s182 = smul.addr %s181, 3
        %s183 = smul.addr %s179, 3
        %s184 = sadd.s32 %s182, %s183
        %s185 = smul.addr %s184, 2
        %s186 = scalar_lea.vmem %s0, %s185
      $region28: #{upconv_forward.1} parent=23 // pred_fallthru
        _
    $region24: #{upconv_forward.1} parent=5 // pred_fallthru
      _
    %p187 = scmp.le.s32.totalorder 1, %s9
    %p188 = scmp.lt.s32.totalorder %s9, 3
    %p189 = pnand %p187, %p188
    %p190 = pneg %p189
    // Predicated region
    $region29: #{upconv_forward.1} parent=5 // pred_check
      _
    $region30: #{upconv_forward.1} parent=5 // pred_check_branch
      %192 = sbr.rel (%p189) target = $region32
    $region31: #{upconv_forward.1} parent=5 // pred_region
      %s193 = ssub.s32 %s9, 1
      %p194 = scmp.lt.s32.totalorder %s19, 1
      %s195 = scalar_select %p194, %s19, 1
      %p196 = scmp.lt.s32.totalorder %s20, 0
      %s197 = scalar_select %p196, %s20, 0
      %s198 = smul.addr %s197, 3
      %s199 = smul.addr %s195, 3
      %s200 = sadd.s32 %s198, %s199
      %s201 = smul.addr %s200, 2
      %s202 = scalar_lea.vmem %s0, %s201
      %p203 = pneg %p56
      %p204 = pneg %p53
      %s205 = smul.u32 2, %s21
      %p206 = scmp.lt.s32.totalorder %s205, 1
      %s207 = scalar_select %p206, %s205, 1
      %s208 = smul.addr %s207, 4
      %s209 = scalar_lea.vmem %s1, %s208
      %p210 = pneg %p82
      %p211 = pneg %p79
      %s212 = smul.u32 2, %s21
      %p213 = scmp.lt.s32.totalorder %s212, 1
      %s214 = scalar_select %p213, %s212, 1
      %s215 = smul.addr %s214, 8
      %s216 = scalar_lea.vmem %s2, %s215
      %p217 = pneg %p108
      %p218 = pneg %p105
      %p219 = pneg %p138
      %p220 = pneg %p135
      %s221 = smul.u32 2, %s21
      %s222 = smul.u32 3, %s20
      %p223 = scmp.lt.s32.totalorder %s19, 1
      %s224 = scalar_select %p223, %s19, 1
      %p225 = scmp.lt.s32.totalorder %s221, 1
      %s226 = scalar_select %p225, %s221, 1
      %p227 = scmp.lt.s32.totalorder %s222, 2
      %s228 = scalar_select %p227, %s222, 2
      %s229 = smul.addr %s226, 3
      %s230 = sadd.s32 %s228, %s229
      %s231 = smul.addr %s224, 6
      %s232 = sadd.s32 %s230, %s231
      %s233 = smul.addr %s232, 8
      %s234 = scalar_lea.vmem %s3, %s233
      %p235 = scmp.lt.s32.totalorder %s19, 1
      %s236 = scalar_select %p235, %s19, 1
      %p237 = scmp.lt.s32.totalorder %s20, 0
      %s238 = scalar_select %p237, %s20, 0
      %s239 = smul.addr %s238, 3
      %s240 = smul.addr %s236, 3
      %s241 = sadd.s32 %s239, %s240
      %s242 = smul.addr %s241, 2
      %s243 = scalar_lea.vmem %s0, %s242
      %s244 = smul.u32 2, %s21
      %p245 = scmp.lt.s32.totalorder %s244, 1
      %s246 = scalar_select %p245, %s244, 1
      %s247 = smul.addr %s246, 4
      %s248 = scalar_lea.vmem %s1, %s247
      %s249 = smul.u32 2, %s21
      %s250 = smul.u32 2, %s21
      %p251 = scmp.lt.s32.totalorder %s250, 1
      %s252 = scalar_select %p251, %s250, 1
      %s253 = smul.addr %s252, 8
      %s254 = scalar_lea.vmem %s2, %s253
      %s255 = smul.u32 2, %s21
      %s256 = smul.u32 2, %s21
      %s257 = smul.u32 3, %s20
      %p258 = scmp.lt.s32.totalorder %s19, 1
      %s259 = scalar_select %p258, %s19, 1
      %p260 = scmp.lt.s32.totalorder %s256, 1
      %s261 = scalar_select %p260, %s256, 1
      %p262 = scmp.lt.s32.totalorder %s257, 2
      %s263 = scalar_select %p262, %s257, 2
      %s264 = smul.addr %s261, 3
      %s265 = sadd.s32 %s263, %s264
      %s266 = smul.addr %s259, 6
      %s267 = sadd.s32 %s265, %s266
      %s268 = smul.addr %s267, 8
      %s269 = scalar_lea.vmem %s3, %s268
      %s270 = smul.u32 2, %s21
      %s271 = smul.u32 3, %s20
      %v273 = vld [vmem:[%s243] sm:$0x3f]
      %v274 = vld [vmem:[%s248] sm:$0xf]
      %v275 = vld [vmem:[%s248 + $0x4] sm:$0xf]
      %s276 = scalar_lea.vmem %s248, 8
      %v277 = vld [vmem:[%s276] sm:$0xf]
      %v278 = vld [vmem:[%s276 + $0x4] sm:$0xf]
      %v281 = vunpack.c.l.b16 %v277
      %v282 = vunpack.c.l.b16 %v278
      %v283 = vpack.c.b16 %v282, %v281
      %285 = vst [vmem:[#allocation1] ss:$4 sm:$0xff] %v273
      %v286 = vld.sshfl [vmem:[#allocation1] sm:$0xff pattern:$0x73625140]
      %v288 = vld.sshfl [vmem:[#allocation1 + $0x8] sm:$0xff pattern:$0x73625140]
      %v290 = vld.sshfl [vmem:[#allocation1 + $0x10] sm:$0xff pattern:$0x73625140]
      %292 = vrot.lane.b32.xlu0 %v286, 127
      %v293 = vpop.permute.xlu0 %292
      %294 = vrot.lane.b32.xlu0 %v288, 127
      %v295 = vpop.permute.xlu0 %294
      %296 = vrot.lane.b32.xlu0 %v290, 127
      %v297 = vpop.permute.xlu0 %296
      %vm298 = vcmask 1039360
      %v299 = vsel %vm298, %v293, %v295
      %v300 = vsel %vm298, %v295, %v297
      %vm301 = vcmask 31744
      %v303 = vsel %vm301, %v283, 0
      %vm305 = vcmask 1041408
      %v307 = vsel %vm305, %v299, 0
      %v310 = vsel %vm305, %v300, 0
      %v313 = vsel %vm305, %v297, 0
      %315 = vmatpush.bf16.msra.mxu0 0
      %316 = vmatpush.bf16.msra.mxu0 0
      %317 = vmatpush.bf16.msra.mxu0 0
      %318 = vmatpush.bf16.msra.mxu0 0
      %319 = vmatpush.bf16.msra.mxu0 0
      %320 = vmatpush.bf16.msra.mxu0 0
      %321 = vmatpush.bf16.msra.mxu0 0
      %322 = vmatpush.bf16.msra.mxu0 %v307
      %323 = vmatmul.bf16.gmra.mxu0 %v303
      %v324 = vpop.f32.mrf.mxu0
      %v325 = vadd.f32 0.0, %v324
      %v326 = vpop.f32.mrf.mxu0
      %v327 = vadd.f32 0.0, %v326
      %328 = vdwg.mxu0
      %329 = vmatpush.bf16.msra.mxu0 0
      %330 = vmatpush.bf16.msra.mxu0 0
      %331 = vmatpush.bf16.msra.mxu0 0
      %332 = vmatpush.bf16.msra.mxu0 0
      %333 = vmatpush.bf16.msra.mxu0 0
      %334 = vmatpush.bf16.msra.mxu0 0
      %335 = vmatpush.bf16.msra.mxu0 0
      %336 = vmatpush.bf16.msra.mxu0 %v310
      %337 = vmatmul.bf16.gmra.mxu0 %v303
      %v338 = vpop.f32.mrf.mxu0
      %v339 = vadd.f32 0.0, %v338
      %v340 = vpop.f32.mrf.mxu0
      %v341 = vadd.f32 0.0, %v340
      %342 = vdwg.mxu0
      %343 = vmatpush.bf16.msra.mxu0 0
      %344 = vmatpush.bf16.msra.mxu0 0
      %345 = vmatpush.bf16.msra.mxu0 0
      %346 = vmatpush.bf16.msra.mxu0 0
      %347 = vmatpush.bf16.msra.mxu0 0
      %348 = vmatpush.bf16.msra.mxu0 0
      %349 = vmatpush.bf16.msra.mxu0 0
      %350 = vmatpush.bf16.msra.mxu0 %v313
      %351 = vmatmul.bf16.gmra.mxu0 %v303
      %v352 = vpop.f32.mrf.mxu0
      %v353 = vadd.f32 0.0, %v352
      %v354 = vpop.f32.mrf.mxu0
      %v355 = vadd.f32 0.0, %v354
      %356 = vdwg.mxu0
      %v359 = vunpack.c.l.b16 %v274
      %v360 = vunpack.c.l.b16 %v275
      %v361 = vpack.c.b16 %v360, %v359
      %362 = vst [vmem:[#allocation1] ss:$4 sm:$0xff] %v273
      %v363 = vld.sshfl [vmem:[#allocation1] sm:$0xff pattern:$0x73625140]
      %v364 = vld.sshfl [vmem:[#allocation1 + $0x8] sm:$0xff pattern:$0x73625140]
      %v365 = vld.sshfl [vmem:[#allocation1 + $0x10] sm:$0xff pattern:$0x73625140]
      %v367 = vsel %vm301, %v361, 0
      %v369 = vsel %vm305, %v363, 0
      %v371 = vsel %vm305, %v364, 0
      %v373 = vsel %vm305, %v365, 0
      %375 = vmatpush.bf16.msra.mxu0 0
      %376 = vmatpush.bf16.msra.mxu0 0
      %377 = vmatpush.bf16.msra.mxu0 0
      %378 = vmatpush.bf16.msra.mxu0 0
      %379 = vmatpush.bf16.msra.mxu0 0
      %380 = vmatpush.bf16.msra.mxu0 0
      %381 = vmatpush.bf16.msra.mxu0 0
      %382 = vmatpush.bf16.msra.mxu0 %v369
      %383 = vmatmul.bf16.gmra.mxu0 %v367
      %v384 = vpop.f32.mrf.mxu0
      %v385 = vadd.f32 %v325, %v384
      %v386 = vpop.f32.mrf.mxu0
      %v387 = vadd.f32 %v327, %v386
      %388 = vdwg.mxu0
      %389 = vmatpush.bf16.msra.mxu0 0
      %390 = vmatpush.bf16.msra.mxu0 0
      %391 = vmatpush.bf16.msra.mxu0 0
      %392 = vmatpush.bf16.msra.mxu0 0
      %393 = vmatpush.bf16.msra.mxu0 0
      %394 = vmatpush.bf16.msra.mxu0 0
      %395 = vmatpush.bf16.msra.mxu0 0
      %396 = vmatpush.bf16.msra.mxu0 %v371
      %397 = vmatmul.bf16.gmra.mxu0 %v367
      %v398 = vpop.f32.mrf.mxu0
      %v399 = vadd.f32 %v339, %v398
      %v400 = vpop.f32.mrf.mxu0
      %v401 = vadd.f32 %v341, %v400
      %402 = vdwg.mxu0
      %403 = vmatpush.bf16.msra.mxu0 0
      %404 = vmatpush.bf16.msra.mxu0 0
      %405 = vmatpush.bf16.msra.mxu0 0
      %406 = vmatpush.bf16.msra.mxu0 0
      %407 = vmatpush.bf16.msra.mxu0 0
      %408 = vmatpush.bf16.msra.mxu0 0
      %409 = vmatpush.bf16.msra.mxu0 0
      %410 = vmatpush.bf16.msra.mxu0 %v373
      %411 = vmatmul.bf16.gmra.mxu0 %v367
      %v412 = vpop.f32.mrf.mxu0
      %v413 = vadd.f32 %v353, %v412
      %v414 = vpop.f32.mrf.mxu0
      %v415 = vadd.f32 %v355, %v414
      %416 = vdwg.mxu0
      %v417 = vld [vmem:[%s243] sm:$0x3f]
      %s418 = scalar_lea.vmem %s248, 16
      %v419 = vld [vmem:[%s418] sm:$0xf]
      %v420 = vld [vmem:[%s418 + $0x4] sm:$0xf]
      %v423 = vunpack.c.l.b16 %v419
      %v424 = vunpack.c.l.b16 %v420
      %v425 = vpack.c.b16 %v424, %v423
      %427 = vst [vmem:[#allocation1] ss:$4 sm:$0xff] %v417
      %v428 = vld.sshfl [vmem:[#allocation1] sm:$0xff pattern:$0x73625140]
      %v430 = vld.sshfl [vmem:[#allocation1 + $0x8] sm:$0xff pattern:$0x73625140]
      %v432 = vld.sshfl [vmem:[#allocation1 + $0x10] sm:$0xff pattern:$0x73625140]
      %434 = vrot.lane.b32.xlu0 %v428, 126
      %v435 = vpop.permute.xlu0 %434
      %436 = vrot.lane.b32.xlu0 %v430, 126
      %v437 = vpop.permute.xlu0 %436
      %438 = vrot.lane.b32.xlu0 %v432, 126
      %v439 = vpop.permute.xlu0 %438
      %vm440 = vcmask 1031168
      %v441 = vsel %vm440, %v435, %v437
      %v442 = vsel %vm440, %v437, %v439
      %v444 = vsel %vm301, %v425, 0
      %v447 = vsel %vm305, %v441, 0
      %v450 = vsel %vm305, %v442, 0
      %v453 = vsel %vm305, %v439, 0
      %455 = vmatpush.bf16.msra.mxu0 0
      %456 = vmatpush.bf16.msra.mxu0 0
      %457 = vmatpush.bf16.msra.mxu0 0
      %458 = vmatpush.bf16.msra.mxu0 0
      %459 = vmatpush.bf16.msra.mxu0 0
      %460 = vmatpush.bf16.msra.mxu0 0
      %461 = vmatpush.bf16.msra.mxu0 0
      %462 = vmatpush.bf16.msra.mxu0 %v447
      %463 = vmatmul.bf16.gmra.mxu0 %v444
      %v464 = vpop.f32.mrf.mxu0
      %v465 = vadd.f32 0.0, %v464
      %v466 = vpop.f32.mrf.mxu0
      %v467 = vadd.f32 0.0, %v466
      %468 = vdwg.mxu0
      %469 = vmatpush.bf16.msra.mxu0 0
      %470 = vmatpush.bf16.msra.mxu0 0
      %471 = vmatpush.bf16.msra.mxu0 0
      %472 = vmatpush.bf16.msra.mxu0 0
      %473 = vmatpush.bf16.msra.mxu0 0
      %474 = vmatpush.bf16.msra.mxu0 0
      %475 = vmatpush.bf16.msra.mxu0 0
      %476 = vmatpush.bf16.msra.mxu0 %v450
      %477 = vmatmul.bf16.gmra.mxu0 %v444
      %v478 = vpop.f32.mrf.mxu0
      %v479 = vadd.f32 0.0, %v478
      %v480 = vpop.f32.mrf.mxu0
      %v481 = vadd.f32 0.0, %v480
      %482 = vdwg.mxu0
      %483 = vmatpush.bf16.msra.mxu0 0
      %484 = vmatpush.bf16.msra.mxu0 0
      %485 = vmatpush.bf16.msra.mxu0 0
      %486 = vmatpush.bf16.msra.mxu0 0
      %487 = vmatpush.bf16.msra.mxu0 0
      %488 = vmatpush.bf16.msra.mxu0 0
      %489 = vmatpush.bf16.msra.mxu0 0
      %490 = vmatpush.bf16.msra.mxu0 %v453
      %491 = vmatmul.bf16.gmra.mxu0 %v444
      %v492 = vpop.f32.mrf.mxu0
      %v493 = vadd.f32 0.0, %v492
      %v494 = vpop.f32.mrf.mxu0
      %v495 = vadd.f32 0.0, %v494
      %496 = vdwg.mxu0
      %v497 = vadd.f32 %v385, %v465
      %v498 = vadd.f32 %v399, %v479
      %v499 = vadd.f32 %v413, %v493
      %v500 = vadd.f32 %v387, %v467
      %v501 = vadd.f32 %v401, %v481
      %v502 = vadd.f32 %v415, %v495
      %v503 = vld [vmem:[%s243] sm:$0x3f]
      %s504 = scalar_lea.vmem %s248, 24
      %v505 = vld [vmem:[%s504] sm:$0xf]
      %v506 = vld [vmem:[%s504 + $0x4] sm:$0xf]
      %v509 = vunpack.c.l.b16 %v505
      %v510 = vunpack.c.l.b16 %v506
      %v511 = vpack.c.b16 %v510, %v509
      %513 = vst [vmem:[#allocation1] ss:$4 sm:$0xff] %v503
      %v514 = vld.sshfl [vmem:[#allocation1] sm:$0xff pattern:$0x73625140]
      %v516 = vld.sshfl [vmem:[#allocation1 + $0x8] sm:$0xff pattern:$0x73625140]
      %v518 = vld.sshfl [vmem:[#allocation1 + $0x10] sm:$0xff pattern:$0x73625140]
      %520 = vrot.lane.b32.xlu0 %v514, 110
      %v521 = vpop.permute.xlu0 %520
      %522 = vrot.lane.b32.xlu0 %v516, 110
      %v523 = vpop.permute.xlu0 %522
      %524 = vrot.lane.b32.xlu0 %v518, 110
      %v525 = vpop.permute.xlu0 %524
      %vm526 = vcmask 900096
      %v527 = vsel %vm526, %v521, %v523
      %v528 = vsel %vm526, %v523, %v525
      %v530 = vsel %vm301, %v511, 0
      %v533 = vsel %vm305, %v527, 0
      %v536 = vsel %vm305, %v528, 0
      %v539 = vsel %vm305, %v525, 0
      %541 = vmatpush.bf16.msra.mxu0 0
      %542 = vmatpush.bf16.msra.mxu0 0
      %543 = vmatpush.bf16.msra.mxu0 0
      %544 = vmatpush.bf16.msra.mxu0 0
      %545 = vmatpush.bf16.msra.mxu0 0
      %546 = vmatpush.bf16.msra.mxu0 0
      %547 = vmatpush.bf16.msra.mxu0 0
      %548 = vmatpush.bf16.msra.mxu0 %v533
      %549 = vmatmul.bf16.gmra.mxu0 %v530
      %v550 = vpop.f32.mrf.mxu0
      %v551 = vadd.f32 0.0, %v550
      %v552 = vpop.f32.mrf.mxu0
      %v553 = vadd.f32 0.0, %v552
      %554 = vdwg.mxu0
      %555 = vmatpush.bf16.msra.mxu0 0
      %556 = vmatpush.bf16.msra.mxu0 0
      %557 = vmatpush.bf16.msra.mxu0 0
      %558 = vmatpush.bf16.msra.mxu0 0
      %559 = vmatpush.bf16.msra.mxu0 0
      %560 = vmatpush.bf16.msra.mxu0 0
      %561 = vmatpush.bf16.msra.mxu0 0
      %562 = vmatpush.bf16.msra.mxu0 %v536
      %563 = vmatmul.bf16.gmra.mxu0 %v530
      %v564 = vpop.f32.mrf.mxu0
      %v565 = vadd.f32 0.0, %v564
      %v566 = vpop.f32.mrf.mxu0
      %v567 = vadd.f32 0.0, %v566
      %568 = vdwg.mxu0
      %569 = vmatpush.bf16.msra.mxu0 0
      %570 = vmatpush.bf16.msra.mxu0 0
      %571 = vmatpush.bf16.msra.mxu0 0
      %572 = vmatpush.bf16.msra.mxu0 0
      %573 = vmatpush.bf16.msra.mxu0 0
      %574 = vmatpush.bf16.msra.mxu0 0
      %575 = vmatpush.bf16.msra.mxu0 0
      %576 = vmatpush.bf16.msra.mxu0 %v539
      %577 = vmatmul.bf16.gmra.mxu0 %v530
      %v578 = vpop.f32.mrf.mxu0
      %v579 = vadd.f32 0.0, %v578
      %v580 = vpop.f32.mrf.mxu0
      %v581 = vadd.f32 0.0, %v580
      %582 = vdwg.mxu0
      %v583 = vadd.f32 %v497, %v551
      %v584 = vadd.f32 %v498, %v565
      %v585 = vadd.f32 %v499, %v579
      %v586 = vadd.f32 %v500, %v553
      %v587 = vadd.f32 %v501, %v567
      %v588 = vadd.f32 %v502, %v581
      %v589 = vld [vmem:[%s243] sm:$0x3f]
      %s590 = scalar_lea.vmem %s248, 32
      %v591 = vld [vmem:[%s590] sm:$0xf]
      %v592 = vld [vmem:[%s590 + $0x4] sm:$0xf]
      %v595 = vunpack.c.l.b16 %v591
      %v596 = vunpack.c.l.b16 %v592
      %v597 = vpack.c.b16 %v596, %v595
      %599 = vst [vmem:[#allocation1] ss:$4 sm:$0xff] %v589
      %v600 = vld.sshfl [vmem:[#allocation1] sm:$0xff pattern:$0x73625140]
      %v602 = vld.sshfl [vmem:[#allocation1 + $0x8] sm:$0xff pattern:$0x73625140]
      %v604 = vld.sshfl [vmem:[#allocation1 + $0x10] sm:$0xff pattern:$0x73625140]
      %606 = vrot.lane.b32.xlu0 %v600, 109
      %v607 = vpop.permute.xlu0 %606
      %608 = vrot.lane.b32.xlu0 %v602, 109
      %v609 = vpop.permute.xlu0 %608
      %610 = vrot.lane.b32.xlu0 %v604, 109
      %v611 = vpop.permute.xlu0 %610
      %vm612 = vcmask 891904
      %v613 = vsel %vm612, %v607, %v609
      %v614 = vsel %vm612, %v609, %v611
      %v616 = vsel %vm301, %v597, 0
      %v619 = vsel %vm305, %v613, 0
      %v622 = vsel %vm305, %v614, 0
      %v625 = vsel %vm305, %v611, 0
      %627 = vmatpush.bf16.msra.mxu0 0
      %628 = vmatpush.bf16.msra.mxu0 0
      %629 = vmatpush.bf16.msra.mxu0 0
      %630 = vmatpush.bf16.msra.mxu0 0
      %631 = vmatpush.bf16.msra.mxu0 0
      %632 = vmatpush.bf16.msra.mxu0 0
      %633 = vmatpush.bf16.msra.mxu0 0
      %634 = vmatpush.bf16.msra.mxu0 %v619
      %635 = vmatmul.bf16.gmra.mxu0 %v616
      %v636 = vpop.f32.mrf.mxu0
      %v637 = vadd.f32 0.0, %v636
      %v638 = vpop.f32.mrf.mxu0
      %v639 = vadd.f32 0.0, %v638
      %640 = vdwg.mxu0
      %641 = vmatpush.bf16.msra.mxu0 0
      %642 = vmatpush.bf16.msra.mxu0 0
      %643 = vmatpush.bf16.msra.mxu0 0
      %644 = vmatpush.bf16.msra.mxu0 0
      %645 = vmatpush.bf16.msra.mxu0 0
      %646 = vmatpush.bf16.msra.mxu0 0
      %647 = vmatpush.bf16.msra.mxu0 0
      %648 = vmatpush.bf16.msra.mxu0 %v622
      %649 = vmatmul.bf16.gmra.mxu0 %v616
      %v650 = vpop.f32.mrf.mxu0
      %v651 = vadd.f32 0.0, %v650
      %v652 = vpop.f32.mrf.mxu0
      %v653 = vadd.f32 0.0, %v652
      %654 = vdwg.mxu0
      %655 = vmatpush.bf16.msra.mxu0 0
      %656 = vmatpush.bf16.msra.mxu0 0
      %657 = vmatpush.bf16.msra.mxu0 0
      %658 = vmatpush.bf16.msra.mxu0 0
      %659 = vmatpush.bf16.msra.mxu0 0
      %660 = vmatpush.bf16.msra.mxu0 0
      %661 = vmatpush.bf16.msra.mxu0 0
      %662 = vmatpush.bf16.msra.mxu0 %v625
      %663 = vmatmul.bf16.gmra.mxu0 %v616
      %v664 = vpop.f32.mrf.mxu0
      %v665 = vadd.f32 0.0, %v664
      %v666 = vpop.f32.mrf.mxu0
      %v667 = vadd.f32 0.0, %v666
      %668 = vdwg.mxu0
      %v669 = vadd.f32 %v583, %v637
      %v670 = vadd.f32 %v584, %v651
      %v671 = vadd.f32 %v585, %v665
      %v672 = vadd.f32 %v586, %v639
      %v673 = vadd.f32 %v587, %v653
      %v674 = vadd.f32 %v588, %v667
      %v675 = vld [vmem:[%s243] sm:$0x3f]
      %s676 = scalar_lea.vmem %s248, 40
      %v677 = vld [vmem:[%s676] sm:$0xf]
      %v678 = vld [vmem:[%s676 + $0x4] sm:$0xf]
      %v681 = vunpack.c.l.b16 %v677
      %v682 = vunpack.c.l.b16 %v678
      %v683 = vpack.c.b16 %v682, %v681
      %685 = vst [vmem:[#allocation1] ss:$4 sm:$0xff] %v675
      %v686 = vld.sshfl [vmem:[#allocation1] sm:$0xff pattern:$0x73625140]
      %v688 = vld.sshfl [vmem:[#allocation1 + $0x8] sm:$0xff pattern:$0x73625140]
      %v690 = vld.sshfl [vmem:[#allocation1 + $0x10] sm:$0xff pattern:$0x73625140]
      %692 = vrot.lane.b32.xlu0 %v686, 108
      %v693 = vpop.permute.xlu0 %692
      %694 = vrot.lane.b32.xlu0 %v688, 108
      %v695 = vpop.permute.xlu0 %694
      %696 = vrot.lane.b32.xlu0 %v690, 108
      %v697 = vpop.permute.xlu0 %696
      %vm698 = vcmask 883712
      %v699 = vsel %vm698, %v693, %v695
      %v700 = vsel %vm698, %v695, %v697
      %v702 = vsel %vm301, %v683, 0
      %v705 = vsel %vm305, %v699, 0
      %v708 = vsel %vm305, %v700, 0
      %v711 = vsel %vm305, %v697, 0
      %713 = vmatpush.bf16.msra.mxu0 0
      %714 = vmatpush.bf16.msra.mxu0 0
      %715 = vmatpush.bf16.msra.mxu0 0
      %716 = vmatpush.bf16.msra.mxu0 0
      %717 = vmatpush.bf16.msra.mxu0 0
      %718 = vmatpush.bf16.msra.mxu0 0
      %719 = vmatpush.bf16.msra.mxu0 0
      %720 = vmatpush.bf16.msra.mxu0 %v705
      %721 = vmatmul.bf16.gmra.mxu0 %v702
      %v722 = vpop.f32.mrf.mxu0
      %v723 = vadd.f32 0.0, %v722
      %v724 = vpop.f32.mrf.mxu0
      %v725 = vadd.f32 0.0, %v724
      %726 = vdwg.mxu0
      %727 = vmatpush.bf16.msra.mxu0 0
      %728 = vmatpush.bf16.msra.mxu0 0
      %729 = vmatpush.bf16.msra.mxu0 0
      %730 = vmatpush.bf16.msra.mxu0 0
      %731 = vmatpush.bf16.msra.mxu0 0
      %732 = vmatpush.bf16.msra.mxu0 0
      %733 = vmatpush.bf16.msra.mxu0 0
      %734 = vmatpush.bf16.msra.mxu0 %v708
      %735 = vmatmul.bf16.gmra.mxu0 %v702
      %v736 = vpop.f32.mrf.mxu0
      %v737 = vadd.f32 0.0, %v736
      %v738 = vpop.f32.mrf.mxu0
      %v739 = vadd.f32 0.0, %v738
      %740 = vdwg.mxu0
      %741 = vmatpush.bf16.msra.mxu0 0
      %742 = vmatpush.bf16.msra.mxu0 0
      %743 = vmatpush.bf16.msra.mxu0 0
      %744 = vmatpush.bf16.msra.mxu0 0
      %745 = vmatpush.bf16.msra.mxu0 0
      %746 = vmatpush.bf16.msra.mxu0 0
      %747 = vmatpush.bf16.msra.mxu0 0
      %748 = vmatpush.bf16.msra.mxu0 %v711
      %749 = vmatmul.bf16.gmra.mxu0 %v702
      %v750 = vpop.f32.mrf.mxu0
      %v751 = vadd.f32 0.0, %v750
      %v752 = vpop.f32.mrf.mxu0
      %v753 = vadd.f32 0.0, %v752
      %754 = vdwg.mxu0
      %v755 = vadd.f32 %v669, %v723
      %v756 = vadd.f32 %v670, %v737
      %v757 = vadd.f32 %v671, %v751
      %v758 = vadd.f32 %v672, %v725
      %v759 = vadd.f32 %v673, %v739
      %v760 = vadd.f32 %v674, %v753
      %v761 = vld [vmem:[%s243] sm:$0x3f]
      %s762 = scalar_lea.vmem %s248, 48
      %v763 = vld [vmem:[%s762] sm:$0xf]
      %v764 = vld [vmem:[%s762 + $0x4] sm:$0xf]
      %v767 = vunpack.c.l.b16 %v763
      %v768 = vunpack.c.l.b16 %v764
      %v769 = vpack.c.b16 %v768, %v767
      %771 = vst [vmem:[#allocation1] ss:$4 sm:$0xff] %v761
      %v772 = vld.sshfl [vmem:[#allocation1] sm:$0xff pattern:$0x73625140]
      %v774 = vld.sshfl [vmem:[#allocation1 + $0x8] sm:$0xff pattern:$0x73625140]
      %v776 = vld.sshfl [vmem:[#allocation1 + $0x10] sm:$0xff pattern:$0x73625140]
      %778 = vrot.lane.b32.xlu0 %v772, 92
      %v779 = vpop.permute.xlu0 %778
      %780 = vrot.lane.b32.xlu0 %v774, 92
      %v781 = vpop.permute.xlu0 %780
      %782 = vrot.lane.b32.xlu0 %v776, 92
      %v783 = vpop.permute.xlu0 %782
      %vm784 = vcmask 752640
      %v785 = vsel %vm784, %v779, %v781
      %v786 = vsel %vm784, %v781, %v783
      %v788 = vsel %vm301, %v769, 0
      %v791 = vsel %vm305, %v785, 0
      %v794 = vsel %vm305, %v786, 0
      %v797 = vsel %vm305, %v783, 0
      %799 = vmatpush.bf16.msra.mxu0 0
      %800 = vmatpush.bf16.msra.mxu0 0
      %801 = vmatpush.bf16.msra.mxu0 0
      %802 = vmatpush.bf16.msra.mxu0 0
      %803 = vmatpush.bf16.msra.mxu0 0
      %804 = vmatpush.bf16.msra.mxu0 0
      %805 = vmatpush.bf16.msra.mxu0 0
      %806 = vmatpush.bf16.msra.mxu0 %v791
      %807 = vmatmul.bf16.gmra.mxu0 %v788
      %v808 = vpop.f32.mrf.mxu0
      %v809 = vadd.f32 0.0, %v808
      %v810 = vpop.f32.mrf.mxu0
      %v811 = vadd.f32 0.0, %v810
      %812 = vdwg.mxu0
      %813 = vmatpush.bf16.msra.mxu0 0
      %814 = vmatpush.bf16.msra.mxu0 0
      %815 = vmatpush.bf16.msra.mxu0 0
      %816 = vmatpush.bf16.msra.mxu0 0
      %817 = vmatpush.bf16.msra.mxu0 0
      %818 = vmatpush.bf16.msra.mxu0 0
      %819 = vmatpush.bf16.msra.mxu0 0
      %820 = vmatpush.bf16.msra.mxu0 %v794
      %821 = vmatmul.bf16.gmra.mxu0 %v788
      %v822 = vpop.f32.mrf.mxu0
      %v823 = vadd.f32 0.0, %v822
      %v824 = vpop.f32.mrf.mxu0
      %v825 = vadd.f32 0.0, %v824
      %826 = vdwg.mxu0
      %827 = vmatpush.bf16.msra.mxu0 0
      %828 = vmatpush.bf16.msra.mxu0 0
      %829 = vmatpush.bf16.msra.mxu0 0
      %830 = vmatpush.bf16.msra.mxu0 0
      %831 = vmatpush.bf16.msra.mxu0 0
      %832 = vmatpush.bf16.msra.mxu0 0
      %833 = vmatpush.bf16.msra.mxu0 0
      %834 = vmatpush.bf16.msra.mxu0 %v797
      %835 = vmatmul.bf16.gmra.mxu0 %v788
      %v836 = vpop.f32.mrf.mxu0
      %v837 = vadd.f32 0.0, %v836
      %v838 = vpop.f32.mrf.mxu0
      %v839 = vadd.f32 0.0, %v838
      %840 = vdwg.mxu0
      %v841 = vadd.f32 %v755, %v809
      %v842 = vadd.f32 %v756, %v823
      %v843 = vadd.f32 %v757, %v837
      %v844 = vadd.f32 %v758, %v811
      %v845 = vadd.f32 %v759, %v825
      %v846 = vadd.f32 %v760, %v839
      %v847 = vld [vmem:[%s243] sm:$0x3f]
      %s848 = scalar_lea.vmem %s248, 56
      %v849 = vld [vmem:[%s848] sm:$0xf]
      %v850 = vld [vmem:[%s848 + $0x4] sm:$0xf]
      %v853 = vunpack.c.l.b16 %v849
      %v854 = vunpack.c.l.b16 %v850
      %v855 = vpack.c.b16 %v854, %v853
      %857 = vst [vmem:[#allocation1] ss:$4 sm:$0xff] %v847
      %v858 = vld.sshfl [vmem:[#allocation1] sm:$0xff pattern:$0x73625140]
      %v860 = vld.sshfl [vmem:[#allocation1 + $0x8] sm:$0xff pattern:$0x73625140]
      %v862 = vld.sshfl [vmem:[#allocation1 + $0x10] sm:$0xff pattern:$0x73625140]
      %864 = vrot.lane.b32.xlu0 %v858, 91
      %v865 = vpop.permute.xlu0 %864
      %866 = vrot.lane.b32.xlu0 %v860, 91
      %v867 = vpop.permute.xlu0 %866
      %868 = vrot.lane.b32.xlu0 %v862, 91
      %v869 = vpop.permute.xlu0 %868
      %vm870 = vcmask 744448
      %v871 = vsel %vm870, %v865, %v867
      %v872 = vsel %vm870, %v867, %v869
      %v874 = vsel %vm301, %v855, 0
      %v877 = vsel %vm305, %v871, 0
      %v880 = vsel %vm305, %v872, 0
      %v883 = vsel %vm305, %v869, 0
      %885 = vmatpush.bf16.msra.mxu0 0
      %886 = vmatpush.bf16.msra.mxu0 0
      %887 = vmatpush.bf16.msra.mxu0 0
      %888 = vmatpush.bf16.msra.mxu0 0
      %889 = vmatpush.bf16.msra.mxu0 0
      %890 = vmatpush.bf16.msra.mxu0 0
      %891 = vmatpush.bf16.msra.mxu0 0
      %892 = vmatpush.bf16.msra.mxu0 %v877
      %893 = vmatmul.bf16.gmra.mxu0 %v874
      %v894 = vpop.f32.mrf.mxu0
      %v895 = vadd.f32 0.0, %v894
      %v896 = vpop.f32.mrf.mxu0
      %v897 = vadd.f32 0.0, %v896
      %898 = vdwg.mxu0
      %899 = vmatpush.bf16.msra.mxu0 0
      %900 = vmatpush.bf16.msra.mxu0 0
      %901 = vmatpush.bf16.msra.mxu0 0
      %902 = vmatpush.bf16.msra.mxu0 0
      %903 = vmatpush.bf16.msra.mxu0 0
      %904 = vmatpush.bf16.msra.mxu0 0
      %905 = vmatpush.bf16.msra.mxu0 0
      %906 = vmatpush.bf16.msra.mxu0 %v880
      %907 = vmatmul.bf16.gmra.mxu0 %v874
      %v908 = vpop.f32.mrf.mxu0
      %v909 = vadd.f32 0.0, %v908
      %v910 = vpop.f32.mrf.mxu0
      %v911 = vadd.f32 0.0, %v910
      %912 = vdwg.mxu0
      %913 = vmatpush.bf16.msra.mxu0 0
      %914 = vmatpush.bf16.msra.mxu0 0
      %915 = vmatpush.bf16.msra.mxu0 0
      %916 = vmatpush.bf16.msra.mxu0 0
      %917 = vmatpush.bf16.msra.mxu0 0
      %918 = vmatpush.bf16.msra.mxu0 0
      %919 = vmatpush.bf16.msra.mxu0 0
      %920 = vmatpush.bf16.msra.mxu0 %v883
      %921 = vmatmul.bf16.gmra.mxu0 %v874
      %v922 = vpop.f32.mrf.mxu0
      %v923 = vadd.f32 0.0, %v922
      %v924 = vpop.f32.mrf.mxu0
      %v925 = vadd.f32 0.0, %v924
      %926 = vdwg.mxu0
      %v927 = vadd.f32 %v841, %v895
      %v928 = vadd.f32 %v842, %v909
      %v929 = vadd.f32 %v843, %v923
      %v930 = vadd.f32 %v844, %v897
      %v931 = vadd.f32 %v845, %v911
      %v932 = vadd.f32 %v846, %v925
      %v933 = vld [vmem:[%s243] sm:$0x3f]
      %s934 = scalar_lea.vmem %s248, 64
      %v935 = vld [vmem:[%s934] sm:$0xf]
      %v936 = vld [vmem:[%s934 + $0x4] sm:$0xf]
      %v939 = vunpack.c.l.b16 %v935
      %v940 = vunpack.c.l.b16 %v936
      %v941 = vpack.c.b16 %v940, %v939
      %943 = vst [vmem:[#allocation1] ss:$4 sm:$0xff] %v933
      %v944 = vld.sshfl [vmem:[#allocation1] sm:$0xff pattern:$0x73625140]
      %v946 = vld.sshfl [vmem:[#allocation1 + $0x8] sm:$0xff pattern:$0x73625140]
      %v948 = vld.sshfl [vmem:[#allocation1 + $0x10] sm:$0xff pattern:$0x73625140]
      %950 = vrot.lane.b32.xlu0 %v944, 90
      %v951 = vpop.permute.xlu0 %950
      %952 = vrot.lane.b32.xlu0 %v946, 90
      %v953 = vpop.permute.xlu0 %952
      %954 = vrot.lane.b32.xlu0 %v948, 90
      %v955 = vpop.permute.xlu0 %954
      %vm956 = vcmask 736256
      %v957 = vsel %vm956, %v951, %v953
      %v958 = vsel %vm956, %v953, %v955
      %v960 = vsel %vm301, %v941, 0
      %v963 = vsel %vm305, %v957, 0
      %v966 = vsel %vm305, %v958, 0
      %v969 = vsel %vm305, %v955, 0
      %971 = vmatpush.bf16.msra.mxu0 0
      %972 = vmatpush.bf16.msra.mxu0 0
      %973 = vmatpush.bf16.msra.mxu0 0
      %974 = vmatpush.bf16.msra.mxu0 0
      %975 = vmatpush.bf16.msra.mxu0 0
      %976 = vmatpush.bf16.msra.mxu0 0
      %977 = vmatpush.bf16.msra.mxu0 0
      %978 = vmatpush.bf16.msra.mxu0 %v963
      %979 = vmatmul.bf16.gmra.mxu0 %v960
      %v980 = vpop.f32.mrf.mxu0
      %v981 = vadd.f32 0.0, %v980
      %v982 = vpop.f32.mrf.mxu0
      %v983 = vadd.f32 0.0, %v982
      %984 = vdwg.mxu0
      %985 = vmatpush.bf16.msra.mxu0 0
      %986 = vmatpush.bf16.msra.mxu0 0
      %987 = vmatpush.bf16.msra.mxu0 0
      %988 = vmatpush.bf16.msra.mxu0 0
      %989 = vmatpush.bf16.msra.mxu0 0
      %990 = vmatpush.bf16.msra.mxu0 0
      %991 = vmatpush.bf16.msra.mxu0 0
      %992 = vmatpush.bf16.msra.mxu0 %v966
      %993 = vmatmul.bf16.gmra.mxu0 %v960
      %v994 = vpop.f32.mrf.mxu0
      %v995 = vadd.f32 0.0, %v994
      %v996 = vpop.f32.mrf.mxu0
      %v997 = vadd.f32 0.0, %v996
      %998 = vdwg.mxu0
      %999 = vmatpush.bf16.msra.mxu0 0
      %1000 = vmatpush.bf16.msra.mxu0 0
      %1001 = vmatpush.bf16.msra.mxu0 0
      %1002 = vmatpush.bf16.msra.mxu0 0
      %1003 = vmatpush.bf16.msra.mxu0 0
      %1004 = vmatpush.bf16.msra.mxu0 0
      %1005 = vmatpush.bf16.msra.mxu0 0
      %1006 = vmatpush.bf16.msra.mxu0 %v969
      %1007 = vmatmul.bf16.gmra.mxu0 %v960
      %v1008 = vpop.f32.mrf.mxu0
      %v1009 = vadd.f32 0.0, %v1008
      %v1010 = vpop.f32.mrf.mxu0
      %v1011 = vadd.f32 0.0, %v1010
      %1012 = vdwg.mxu0
      %v1013 = vadd.f32 %v927, %v981
      %v1014 = vadd.f32 %v928, %v995
      %v1015 = vadd.f32 %v929, %v1009
      %v1016 = vadd.f32 %v930, %v983
      %v1017 = vadd.f32 %v931, %v997
      %v1018 = vadd.f32 %v932, %v1011
      %v1019 = vld [vmem:[%s254] sm:$0xff]
      %v1020 = vld [vmem:[%s254 + $0x8] sm:$0xff]
      %1022 = vset.pattern.permute.xlu0 0
      %1023 = vperm.xlu0 %1022, %v1019
      %v1024 = vpop.permute.xlu0 %1023
      %1027 = vset.pattern.permute.xlu0 0
      %1028 = vperm.xlu0 %1027, %v1020
      %v1029 = vpop.permute.xlu0 %1028
      %v1031 = vadd.f32 %v1013, %v1024
      %v1032 = vadd.f32 %v1014, %v1024
      %v1033 = vadd.f32 %v1015, %v1024
      %v1034 = vadd.f32 %v1016, %v1029
      %v1035 = vadd.f32 %v1017, %v1029
      %v1036 = vadd.f32 %v1018, %v1029
      %1037 = vst [vmem:[%s269] sm:$0xff] %v1031
      %1038 = vst [vmem:[%s269 + $0x8] sm:$0xff] %v1032
      %vm1039 = vcmask 261120
      %1040 = vst.msk [vmem:[%s269 + $0x10] sm:$0xff] %vm1039, %v1033
      %1041 = vst [vmem:[%s269 + $0x18] sm:$0xff] %v1034
      %1042 = vst [vmem:[%s269 + $0x20] sm:$0xff] %v1035
      %1043 = vst.msk [vmem:[%s269 + $0x28] sm:$0xff] %vm1039, %v1036
      %s1044 = smul.u32 2, %s21
      %s1045 = smul.u32 3, %s20
      %p1046 = scmp.lt.s32.totalorder %s19, 1
      %s1047 = scalar_select %p1046, %s19, 1
      %p1048 = scmp.lt.s32.totalorder %s1044, 1
      %s1049 = scalar_select %p1048, %s1044, 1
      %p1050 = scmp.lt.s32.totalorder %s1045, 2
      %s1051 = scalar_select %p1050, %s1045, 2
      %s1052 = smul.addr %s1049, 3
      %s1053 = sadd.s32 %s1051, %s1052
      %s1054 = smul.addr %s1047, 6
      %s1055 = sadd.s32 %s1053, %s1054
      %s1056 = smul.addr %s1055, 8
      %s1057 = scalar_lea.vmem %s3, %s1056
      // Predicated region
      $region33: #{upconv_forward.1} parent=31 // pred_check
        %p1058 = pneg %p135
      $region34: #{upconv_forward.1} parent=31 // pred_check_branch
        %1060 = sbr.rel (%p1058) target = $region36
      $region35: #{upconv_forward.1} parent=31 // pred_region
        %s1061 = smul.u32 2, %s21
        %s1062 = smul.u32 3, %s20
      $region36: #{upconv_forward.1} parent=31 // pred_fallthru
        _
    $region32: #{upconv_forward.1} parent=5 // pred_fallthru
      _
    %p1063 = scmp.le.s32.totalorder 2, %s9
    // Predicated region
    $region37: #{upconv_forward.1} parent=5 // pred_check
      %p1064 = pneg %p1063
    $region38: #{upconv_forward.1} parent=5 // pred_check_branch
      %1066 = sbr.rel (%p1064) target = $region40
    $region39: #{upconv_forward.1} parent=5 // pred_region
      %s1067 = ssub.s32 %s9, 2
      // Predicated region
      $region41: #{upconv_forward.1} parent=39 // pred_check
        %p1068 = pneg %p141
      $region42: #{upconv_forward.1} parent=39 // pred_check_branch
        %1070 = sbr.rel (%p1068) target = $region44
      $region43: #{upconv_forward.1} parent=39 // pred_region
        %s1071 = smul.u32 2, %s24
        %s1072 = smul.u32 3, %s23
        %p1073 = scmp.lt.s32.totalorder %s22, 1
        %s1074 = scalar_select %p1073, %s22, 1
        %p1075 = scmp.lt.s32.totalorder %s1071, 1
        %s1076 = scalar_select %p1075, %s1071, 1
        %p1077 = scmp.lt.s32.totalorder %s1072, 2
        %s1078 = scalar_select %p1077, %s1072, 2
        %s1079 = smul.addr %s1076, 3
        %s1080 = sadd.s32 %s1078, %s1079
        %s1081 = smul.addr %s1074, 6
        %s1082 = sadd.s32 %s1080, %s1081
        %s1083 = smul.addr %s1082, 8
        %s1084 = scalar_lea.vmem %s3, %s1083
      $region44: #{upconv_forward.1} parent=39 // pred_fallthru
        _
    $region40: #{upconv_forward.1} parent=5 // pred_fallthru
      _
  $region6: #{upconv_forward.1} parent=0 // loop_footer
    %s13 = sadd.s32 1, %s9
  $region7: #{upconv_forward.1} parent=0 // loop_footer_branch
    %8 = sbr.rel target = $region3
  $region8: #{upconv_forward.1} parent=0 // loop_exit
    _

</llo_original>
